<compile_context>
chip_gen: v7x
topology: tpu7x:2x2x1
jax: 0.10.0
libtpu: 0.0.40
codegen_flags: <defaults>
</compile_context>

<pallas_src>
import math

import jax
import jax.numpy as jnp
from jax.experimental import pallas as pl
from jax.experimental.pallas import tpu as pltpu


_ALIGN_BYTES = 4096            # chunk starts on 4 KiB byte boundaries
_SMALL_COPY_BYTES = 4 << 20    # <= 4 MiB: a single DMA, no chunking
_MIN_CHUNK_BYTES = 1 << 20     # never split into chunks smaller than 1 MiB
_LARGE_COPY_BYTES = 64 << 20   # >= 64 MiB: allow a deeper DMA queue (v7x)
_DEFAULT_CHUNKS = 4            # enough outstanding DMAs to saturate v5e / v6e HBM
_V7X_CHUNKS = 16               # deeper queue for v7x's ~3.2 TB/s HBM


def _resolve_size(size, total):
    """Mimic torch.Tensor.view size semantics (supports a single -1)."""
    if isinstance(size, int):
        size = (size,)
    size = tuple(int(s) for s in size)
    if size.count(-1) > 1:
        raise ValueError("only one dimension can be inferred")
    if -1 in size:
        known = 1
        for s in size:
            if s != -1:
                known *= s
        if known == 0 or total % known != 0:
            raise ValueError(f"shape {size} is invalid for input of size {total}")
        size = tuple(total // known if s == -1 else s for s in size)
    if math.prod(size) != total:
        raise ValueError(f"shape {size} is invalid for input of size {total}")
    return size


def _max_chunks(total_bytes):
    """How many concurrent DMAs to issue for a copy of `total_bytes`."""
    if total_bytes <= _SMALL_COPY_BYTES:
        return 1
    chunks = _DEFAULT_CHUNKS
    if total_bytes >= _LARGE_COPY_BYTES:
        # Best-effort v7x detection; conservatively keep 4 chunks on failure.
        try:
            info = pltpu.get_tpu_info()
            name = str(getattr(info, "chip_version", "")).lower()
            if "7" in name:
                chunks = _V7X_CHUNKS
        except Exception:
            pass
    return chunks


def _chunk_bounds(total, itemsize):
    """Static (offset, length) chunks (in elements) covering [0, total)."""
    total_bytes = total * itemsize
    n = _max_chunks(total_bytes)
    if n <= 1:
        return ((0, total),)
    align = max(1, _ALIGN_BYTES // itemsize)          # byte-based alignment
    min_chunk = max(align, (_MIN_CHUNK_BYTES + itemsize - 1) // itemsize)
    chunk = (total + n - 1) // n
    chunk = max(min_chunk, chunk)
    chunk = ((chunk + align - 1) // align) * align    # round up to 4 KiB starts
    bounds = []
    off = 0
    while off < total:
        sz = min(chunk, total - off)
        bounds.append((off, sz))
        off += sz
    return tuple(bounds)


def _alias_kernel(x_hbm, o_hbm):
    # input_output_aliases={0: 0} makes o_hbm the same HBM buffer as x_hbm, so
    # the contiguous element stream is already in place (torch.view is an
    # alias, not a copy).  No DMA or compute is issued.
    del x_hbm, o_hbm


def _make_dma_copy_kernel(bounds):
    """Kernel: copy the flat HBM input to the flat HBM output via direct DMAs."""

    def kernel(x_hbm, o_hbm, sems):
        copies = []
        for i, (off, sz) in enumerate(bounds):
            cp = pltpu.make_async_copy(
                x_hbm.at[pl.ds(off, sz)],
                o_hbm.at[pl.ds(off, sz)],
                sems.at[i],
            )
            cp.start()
            copies.append(cp)
        for cp in copies:
            cp.wait()

    return kernel


def view_pallas(tensor, size, *, force_copy=False):
    """Equivalent of View(size)(tensor).

    Default: alias the input HBM buffer (zero traffic; truly zero-copy when the
    input is donated under jit).  force_copy=True: explicit HBM->HBM DMA copy.
    """
    total = int(tensor.size)
    out_shape = _resolve_size(size, total)

    if not force_copy:
        viewed = pl.pallas_call(
            _alias_kernel,
            out_shape=jax.ShapeDtypeStruct(tensor.shape, tensor.dtype),
            in_specs=[pl.BlockSpec(memory_space=pl.ANY)],
            out_specs=pl.BlockSpec(memory_space=pl.ANY),
            input_output_aliases={0: 0},
        )(tensor)
        # Metadata-only: apply the requested view shape.
        return viewed.reshape(out_shape)

    # Fallback: one read + one write of the contiguous element stream via
    # direct HBM->HBM DMAs (no VMEM staging, no grid).
    itemsize = jnp.dtype(tensor.dtype).itemsize
    # TODO(synk): assumes the default contiguous row-major XLA layout so this
    # flatten is metadata-only (matches torch.view's contiguity requirement).
    flat = tensor.reshape((total,))
    bounds = _chunk_bounds(total, itemsize)

    copied = pl.pallas_call(
        _make_dma_copy_kernel(bounds),
        out_shape=jax.ShapeDtypeStruct((total,), flat.dtype),
        in_specs=[pl.BlockSpec(memory_space=pl.ANY)],
        out_specs=pl.BlockSpec(memory_space=pl.ANY),
        scratch_shapes=[pltpu.SemaphoreType.DMA((len(bounds),))],
        cost_estimate=pl.CostEstimate(
            flops=0, transcendentals=0, bytes_accessed=2 * total * itemsize
        ),
    )(flat)
    return copied.reshape(out_shape)


if __name__ == "__main__":
    key = jax.random.PRNGKey(0)
    # NCHW-style input, as a PyTorch conv feature map would be.
    x = jax.random.normal(key, (2, 4, 16, 16), dtype=jnp.float32)

    # View(size=(2, -1)): flatten per-sample, a typical encoder->latent reshape.
    target_size = (2, -1)
    ref = x.reshape((2, 4 * 16 * 16))

    # Default (alias) path.
    out = jax.block_until_ready(view_pallas(x, target_size))
    assert out.shape == ref.shape, (out.shape, ref.shape)
    assert out.dtype == ref.dtype
    assert bool(jnp.array_equal(out, ref))

    # Explicit DMA-copy fallback (exercises the small-copy single-DMA branch).
    out_copy = jax.block_until_ready(view_pallas(x, target_size, force_copy=True))
    assert out_copy.shape == ref.shape and out_copy.dtype == ref.dtype
    assert bool(jnp.array_equal(out_copy, ref))

    # Narrow dtype + -1 in a different position to exercise size resolution.
    xb = x.astype(jnp.bfloat16)
    ref_b = xb.reshape((-1, 16))
    out_b = jax.block_until_ready(view_pallas(xb, (-1, 16)))
    assert out_b.shape == ref_b.shape and out_b.dtype == ref_b.dtype
    assert bool(jnp.array_equal(out_b, ref_b))

    print("KERNEL_OK")
</pallas_src>

<mosaic_0001>
module attributes {stable_mosaic.version = 11 : i64} {
  func.func @_alias_kernel(%arg0: memref<2x4x16x16xf32, #tpu.memory_space<any>>, %arg1: memref<2x4x16x16xf32, #tpu.memory_space<any>>) attributes {dimension_semantics = [], scalar_prefetch = 0 : i64, scratch_operands = 0 : i64, tpu.core_type = #tpu.core_type<tc>} {
    return
  }
}

</mosaic_0001>

<llo_original>
// kernel: tpu_custom_call.1
$region0: #{tpu_custom_call.1}
  #allocation0 [shape = 'u32[]', space=smem, size = 0x4, offset = 0x4, fixed_abs, tag = 'smem constant byte address 0x4 - core index']
  #allocation1 [shape = 'u32[144,128]{1,0:T(1,128)}', space=vmem, size = 0x12000, scoped, tag = 'internal scratch']
  %s0 = inlined_call_operand.hbm [shape: f32[2,4,16,16], index: 0, kind: input, shape index: {}, may-alias: {0,1}]
  %s1 = inlined_call_operand.hbm [shape: f32[2,4,16,16], index: 1, kind: output, shape index: {}, may-alias: {0,1}]
  %s2 = sld [smem:[#allocation0]]
  $region2: #{tpu_custom_call.1} parent=0
    _
  %s4 = ssub.s32 1, %s2
  %s5 = scalar_select 0, %s4, %s2

</llo_original>
